<compile_context>
chip_gen: v5e
topology: v5e:2x2
jax: 0.10.0
libtpu: 0.0.40
codegen_flags: <defaults>
</compile_context>

<pallas_src>
import functools

import jax
import jax.numpy as jnp
from jax import lax
from jax.experimental import pallas as pl
from jax.experimental.pallas import tpu as pltpu

LANE = 128
CHUNK_TARGET_BYTES = 256 * 1024       # per-input bytes processed per inner chunk
BLOCK_CHUNKS = 8                      # block = up to 8 chunks (~2 MiB / input / block)
VMEM_LIMIT_BYTES = 32 * 1024 * 1024   # safe on v5e/v6e (128 MiB phys) and v7x (64 MiB)


def _cdiv(a: int, b: int) -> int:
    return -(-a // b)


def _round_up(a: int, b: int) -> int:
    return _cdiv(a, b) * b


def _num_parallel_splits() -> int:
    """2 on chips with >1 TensorCore behind a single Pallas kernel, else 1."""
    try:
        kind = jax.devices()[0].device_kind.lower()
    except Exception:
        return 1
    return 2 if any(tag in kind for tag in ("v4", "v5p", "v7")) else 1


def _quartic_kernel(yhat_ref, y_ref, out_ref, *, rows, block_rows, chunk_rows,
                    num_chunks, blocks_per_split, needs_mask):
    j = pl.program_id(0)   # split axis ("parallel"; one per TensorCore on v7x)
    i = pl.program_id(1)   # reduction axis ("arbitrary")

    @pl.when(i == 0)
    def _():
        out_ref[...] = jnp.zeros_like(out_ref)

    # First *logical* row of this grid step (>= rows only for phantom steps).
    row0 = (j * blocks_per_split + i) * block_rows

    def contribution(a, b, base_row, mask_rows):
        d = a.astype(jnp.float32) - b.astype(jnp.float32)
        if mask_rows:
            # Zero rows past the real end of the array (partial/phantom steps
            # read stale VMEM there; zeroing d before squaring kills NaN/Inf).
            rid = lax.broadcasted_iota(jnp.int32, (d.shape[0], 1), 0) + base_row
            d = jnp.where(rid < rows, d, jnp.float32(0.0))
        d2 = d * d
        d4 = d2 * d2
        r, c = d4.shape
        if r % 8 == 0:
            # Leading-axis sum: pure vreg-wise VPU adds into the resident
            # (8, C) accumulator (no cross-lane XLU reduce per step).
            return jnp.sum(d4.reshape(r // 8, 8, c), axis=0)
        # Rare tiny/odd-height block (single-block case with R % 8 != 0):
        # full leading-axis sum placed in row 0 of the (8, C) accumulator.
        row_sum = jnp.sum(d4, axis=0, keepdims=True)              # (1, c)
        sub = lax.broadcasted_iota(jnp.int32, (8, c), 0)
        return jnp.where(sub == 0, row_sum, jnp.float32(0.0))

    def accumulate(mask_rows):
        if num_chunks == 1:
            out_ref[...] += contribution(yhat_ref[...], y_ref[...], row0, mask_rows)
        else:
            # Chunked reduce: bounds Mosaic's block-sized elementwise
            # temporaries to ~chunk size while keeping big (cheap-DMA) blocks.
            def body(c, carry):
                r0 = pl.multiple_of(c * chunk_rows, chunk_rows)
                out_ref[...] += contribution(
                    yhat_ref[pl.ds(r0, chunk_rows), :],
                    y_ref[pl.ds(r0, chunk_rows), :],
                    row0 + r0, mask_rows)
                return carry
            lax.fori_loop(0, num_chunks, body, 0)

    if needs_mask:
        is_tail = row0 + block_rows > rows   # partial or phantom step

        @pl.when(is_tail)
        def _():
            accumulate(True)

        @pl.when(jnp.logical_not(is_tail))
        def _():
            accumulate(False)
    else:
        accumulate(False)


def quartic_loss(y_hat: jax.Array, y: jax.Array) -> jax.Array:
    """mean((y_hat - y)**4), computed in a Pallas TPU reduction kernel."""
    assert y_hat.shape == y.shape, "y_hat and y must have the same shape"
    n = y_hat.size
    if n == 0:
        return jnp.full((), jnp.nan, jnp.float32)   # matches torch.mean of empty

    # Free (no-copy) 2-D views of the inputs.
    if n % LANE == 0:
        R, C = n // LANE, LANE                       # lane-dense fast path
    elif y_hat.ndim >= 2:
        C = y_hat.shape[-1]
        R = n // C                                   # natural trailing-dim collapse
    else:
        R, C = 1, n
    yh2 = y_hat.reshape(R, C)
    y2 = y.reshape(R, C)

    c_padded = _round_up(C, LANE)
    row_bytes = c_padded * 4
    if C != LANE and row_bytes > BLOCK_CHUNKS * CHUNK_TARGET_BYTES:
        # TODO(synk): pathologically wide unaligned trailing dim (> ~512K
        # elements with n % 128 != 0); would need lane-dim blocking + lane
        # masking. Fall back to plain XLA for this corner case.
        d = (y_hat.astype(jnp.float32) - y.astype(jnp.float32)).reshape(-1)
        return jnp.mean(jnp.square(jnp.square(d)))

    num_splits = _num_parallel_splits()
    if R < 16:
        num_splits = 1

    # Chunk / block sizing (multiples of 8 sublanes, VMEM-budgeted).
    chunk_rows = max(8, (CHUNK_TARGET_BYTES // row_bytes) // 8 * 8)
    max_block_rows = chunk_rows * BLOCK_CHUNKS

    rows_per_split = _cdiv(R, num_splits)
    if rows_per_split <= max_block_rows:
        blocks_per_split = 1
        block_rows = R if num_splits == 1 else _round_up(rows_per_split, 8)
        if block_rows <= chunk_rows or block_rows % chunk_rows:
            chunk_rows = block_rows
    else:
        blocks_per_split = _cdiv(rows_per_split, max_block_rows)
        block_rows = min(max_block_rows,
                         _round_up(_cdiv(rows_per_split, blocks_per_split), chunk_rows))
        blocks_per_split = _cdiv(rows_per_split, block_rows)
    num_chunks = block_rows // chunk_rows

    needs_mask = (num_splits * blocks_per_split * block_rows != R)
    if needs_mask:
        last_block = _cdiv(R, block_rows) - 1

        def in_map(j, i):
            # Phantom steps re-read the last real block; the in-kernel row
            # mask zeroes their contribution.
            return (jnp.minimum(j * blocks_per_split + i, last_block), 0)
    else:
        def in_map(j, i):
            return (j * blocks_per_split + i, 0)

    kernel = functools.partial(
        _quartic_kernel,
        rows=R, block_rows=block_rows, chunk_rows=chunk_rows,
        num_chunks=num_chunks, blocks_per_split=blocks_per_split,
        needs_mask=needs_mask)

    out = pl.pallas_call(
        kernel,
        out_shape=jax.ShapeDtypeStruct((num_splits * 8, C), jnp.float32),
        grid_spec=pltpu.PrefetchScalarGridSpec(
            num_scalar_prefetch=0,
            grid=(num_splits, blocks_per_split),
            in_specs=[pl.BlockSpec((block_rows, C), in_map),
                      pl.BlockSpec((block_rows, C), in_map)],
            out_specs=pl.BlockSpec((8, C), lambda j, i: (j, 0)),
        ),
        compiler_params=pltpu.CompilerParams(
            dimension_semantics=("parallel", "arbitrary"),
            vmem_limit_bytes=VMEM_LIMIT_BYTES,
        ),
        cost_estimate=pl.CostEstimate(
            flops=4 * n,
            transcendentals=0,
            bytes_accessed=2 * n * y_hat.dtype.itemsize + num_splits * 8 * C * 4),
    )(yh2, y2)

    # Final tiny reduce of the per-split (8, C) partial sums; 1/n folded here.
    return jnp.sum(out) * jnp.float32(1.0 / n)


if __name__ == "__main__":
    key = jax.random.PRNGKey(0)
    k1, k2 = jax.random.split(key)

    # Small shapes consistent with a regression-style loss.
    shape = (2, 4, 16, 16)
    y_hat = jax.random.normal(k1, shape, dtype=jnp.float32)
    y = jax.random.normal(k2, shape, dtype=jnp.float32)

    loss = jax.block_until_ready(quartic_loss(y_hat, y))
    ref = jnp.mean(jnp.square(jnp.square(y_hat - y)))
    assert jnp.allclose(loss, ref, rtol=1e-5, atol=1e-6), (loss, ref)

    # Also exercise the no-pad unaligned path (n % 128 != 0).
    shape2 = (3, 5, 7)
    yh_u = jax.random.normal(k1, shape2, dtype=jnp.float32)
    y_u = jax.random.normal(k2, shape2, dtype=jnp.float32)
    loss_u = jax.block_until_ready(quartic_loss(yh_u, y_u))
    ref_u = jnp.mean(jnp.square(jnp.square(yh_u - y_u)))
    assert jnp.allclose(loss_u, ref_u, rtol=1e-5, atol=1e-6), (loss_u, ref_u)

    print("KERNEL_OK")
</pallas_src>

<mosaic_0001>
module attributes {stable_mosaic.version = 11 : i64} {
  func.func @_quartic_kernel(%arg0: i32, %arg1: i32, %arg2: memref<16x128xf32, #tpu.memory_space<vmem>>, %arg3: memref<16x128xf32, #tpu.memory_space<vmem>>, %arg4: memref<8x128xf32, #tpu.memory_space<vmem>>) attributes {dimension_semantics = [#tpu.dimension_semantics<parallel>, #tpu.dimension_semantics<arbitrary>], iteration_bounds = array<i64: 1, 1>, scalar_prefetch = 0 : i64, scratch_operands = 0 : i64, tpu.core_type = #tpu.core_type<tc>, window_params = [{transform_indices = @transform_0, window_bounds = array<i64: 16, 128>}, {transform_indices = @transform_1, window_bounds = array<i64: 16, 128>}, {transform_indices = @transform_2, window_bounds = array<i64: 8, 128>}]} {
    %c0_i32 = arith.constant 0 : i32
    %0 = arith.cmpi eq, %arg1, %c0_i32 : i32
    %1 = arith.extui %0 : i1 to i32
    %c0_i32_0 = arith.constant 0 : i32
    %2 = arith.cmpi ne, %1, %c0_i32_0 : i32
    scf.if %2 {
      %cst_8 = arith.constant 0.000000e+00 : f32
      %13 = vector.broadcast %cst_8 : f32 to vector<8x128xf32>
      %c0_9 = arith.constant 0 : index
      %c0_10 = arith.constant 0 : index
      %14 = vector.load %arg4[%c0_9, %c0_10] : memref<8x128xf32, #tpu.memory_space<vmem>>, vector<8x128xf32>
      tpu.vector_store %arg4[%c0_9, %c0_10], %13 {strides = array<i32>} : memref<8x128xf32, #tpu.memory_space<vmem>>, vector<8x128xf32>,
    } else {
    }
    %c0 = arith.constant 0 : index
    %c0_1 = arith.constant 0 : index
    %3 = vector.load %arg4[%c0, %c0_1] : memref<8x128xf32, #tpu.memory_space<vmem>>, vector<8x128xf32>
    %c0_2 = arith.constant 0 : index
    %c0_3 = arith.constant 0 : index
    %4 = vector.load %arg2[%c0_2, %c0_3] : memref<16x128xf32, #tpu.memory_space<vmem>>, vector<16x128xf32>
    %c0_4 = arith.constant 0 : index
    %c0_5 = arith.constant 0 : index
    %5 = vector.load %arg3[%c0_4, %c0_5] : memref<16x128xf32, #tpu.memory_space<vmem>>, vector<16x128xf32>
    %6 = arith.subf %4, %5 : vector<16x128xf32>
    %7 = arith.mulf %6, %6 : vector<16x128xf32>
    %8 = arith.mulf %7, %7 : vector<16x128xf32>
    %9 = vector.shape_cast %8 : vector<16x128xf32> to vector<2x8x128xf32>
    %cst = arith.constant dense<0.000000e+00> : vector<8x128xf32>
    %10 = vector.multi_reduction <add>, %9, %cst [0] : vector<2x8x128xf32> to vector<8x128xf32>
    %11 = arith.addf %3, %10 : vector<8x128xf32>
    %c0_6 = arith.constant 0 : index
    %c0_7 = arith.constant 0 : index
    %12 = vector.load %arg4[%c0_6, %c0_7] : memref<8x128xf32, #tpu.memory_space<vmem>>, vector<8x128xf32>
    tpu.vector_store %arg4[%c0_6, %c0_7], %11 {strides = array<i32>} : memref<8x128xf32, #tpu.memory_space<vmem>>, vector<8x128xf32>,
    return
  }
  func.func @transform_0(%arg0: i32, %arg1: i32) -> (i32, i32) {
    %c1_i32 = arith.constant 1 : i32
    %0 = arith.muli %arg0, %c1_i32 : i32
    %1 = arith.addi %0, %arg1 : i32
    %c0_i32 = arith.constant 0 : i32
    %c0_i32_0 = arith.constant 0 : i32
    return %1, %c0_i32 : i32, i32
  }
  func.func @transform_1(%arg0: i32, %arg1: i32) -> (i32, i32) {
    %c1_i32 = arith.constant 1 : i32
    %0 = arith.muli %arg0, %c1_i32 : i32
    %1 = arith.addi %0, %arg1 : i32
    %c0_i32 = arith.constant 0 : i32
    %c0_i32_0 = arith.constant 0 : i32
    return %1, %c0_i32 : i32, i32
  }
  func.func @transform_2(%arg0: i32, %arg1: i32) -> (i32, i32) {
    %c0_i32 = arith.constant 0 : i32
    %c0_i32_0 = arith.constant 0 : i32
    return %arg0, %c0_i32 : i32, i32
  }
}

</mosaic_0001>

<llo_original>
// kernel: tpu_custom_call.1
$region0: #{tpu_custom_call.1}
  #allocation0 [shape = 'u32[]', space=smem, size = 0x4, offset = 0x4, fixed_abs, tag = 'smem constant byte address 0x4 - core index']
  #allocation1 [shape = 'u32[72,128]{1,0:T(1,128)}', space=vmem, size = 0x9000, scoped, tag = 'internal scratch']
  %s0 = inlined_call_operand.hbm [shape: f32[16,128], index: 0, kind: input, shape index: {}]
  %s1 = inlined_call_operand.hbm [shape: f32[16,128], index: 1, kind: input, shape index: {}]
  %s2 = inlined_call_operand.hbm [shape: f32[8,128], index: 2, kind: output, shape index: {}]
  %s3 = sld [smem:[#allocation0]]
  $region30: #{tpu_custom_call.1} parent=0
    _
  %s5 = ssub.s32 1, %s3
  %s6 = scalar_select 0, %s5, %s3
  $region1: #{tpu_custom_call.1} parent=0
    #allocation2 [shape = 'u8[8192]{0}', space=vmem, size = 0x2000, scoped, tag = 'input window, operand 0, single buffered']
    #allocation3 [shape = 's32[1]{0}', space=sflag, size = 0x4, scoped, tag = 'scoped memory for tpu_custom_call.1']
    #allocation4 [shape = 's32[1]{0}', space=sflag, size = 0x4, scoped, tag = 'scoped memory for tpu_custom_call.1']
    #allocation5 [shape = 'u8[8192]{0}', space=vmem, size = 0x2000, scoped, tag = 'input window, operand 1, single buffered']
    #allocation6 [shape = 's32[1]{0}', space=sflag, size = 0x4, scoped, tag = 'scoped memory for tpu_custom_call.1']
    #allocation7 [shape = 'u8[4096]{0}', space=vmem, size = 0x1000, scoped, tag = 'output window, operand 0, single buffered']
    %7 = vsyncpa [#allocation3], 0
    %8 = vsyncpa [#allocation6], 0
    %9 = vsyncpa [#allocation4], 0
    // Predicated region
    $region2: #{tpu_custom_call.1} parent=1 // pred_check
      _
    $region3: #{tpu_custom_call.1} parent=1 // pred_check_branch
      %11 = sbr.rel (0) target = $region5
    $region4: #{tpu_custom_call.1} parent=1 // pred_region
      %s12 = sadd.s32 0, 0
      %s13 = smul.u32 2, %s12
      %15 = vsyncadd [#allocation3], 0
      %s16 = smul.addr %s13, 8
      %s17 = scalar_lea.hbm %s0, %s16
      %s18 = sshll.u32 %s17, 4
      %s19 = int_to_ptr.hbm [resolvable:$true] %s18
      %s20 = sshll.u32 [#allocation2], 4
      %s21 = int_to_ptr.vmem [resolvable:$true] %s20
      %26 = dma.hbm_to_vmem [thread:$0]  %s19, 256, %s21, [#allocation3], 128, 128, 8
    $region5: #{tpu_custom_call.1} parent=1 // pred_fallthru
      _
    // Predicated region
    $region6: #{tpu_custom_call.1} parent=1 // pred_check
      _
    $region7: #{tpu_custom_call.1} parent=1 // pred_check_branch
      %28 = sbr.rel (0) target = $region9
    $region8: #{tpu_custom_call.1} parent=1 // pred_region
      %s29 = sadd.s32 0, 0
      %s30 = smul.u32 2, %s29
      %32 = vsyncadd [#allocation6], 0
      %s33 = smul.addr %s30, 8
      %s34 = scalar_lea.hbm %s1, %s33
      %s35 = sshll.u32 %s34, 4
      %s36 = int_to_ptr.hbm [resolvable:$true] %s35
      %s37 = sshll.u32 [#allocation5], 4
      %s38 = int_to_ptr.vmem [resolvable:$true] %s37
      %43 = dma.hbm_to_vmem [thread:$0]  %s36, 256, %s38, [#allocation6], 128, 128, 8
    $region9: #{tpu_custom_call.1} parent=1 // pred_fallthru
      _
    // Predicated region
    $region10: #{tpu_custom_call.1} parent=1 // pred_check
      _
    $region11: #{tpu_custom_call.1} parent=1 // pred_check_branch
      %45 = sbr.rel (0) target = $region13
    $region12: #{tpu_custom_call.1} parent=1 // pred_region
      %47 = dma.done [#allocation3], 256
    $region13: #{tpu_custom_call.1} parent=1 // pred_fallthru
      _
    // Predicated region
    $region14: #{tpu_custom_call.1} parent=1 // pred_check
      _
    $region15: #{tpu_custom_call.1} parent=1 // pred_check_branch
      %49 = sbr.rel (0) target = $region17
    $region16: #{tpu_custom_call.1} parent=1 // pred_region
      %51 = dma.done [#allocation6], 256
    $region17: #{tpu_custom_call.1} parent=1 // pred_fallthru
      _
    %s52 = sadd.s32 0, 0
    %s53 = smul.u32 2, %s52
    %s54 = sadd.s32 0, 0
    %s55 = smul.u32 2, %s54
    %p56 = scmp.eq.s32.totalorder 0, 0
    // Predicated region
    $region18: #{tpu_custom_call.1} parent=1 // pred_check
      %p57 = pneg %p56
    $region19: #{tpu_custom_call.1} parent=1 // pred_check_branch
      %59 = sbr.rel (%p57) target = $region21
    $region20: #{tpu_custom_call.1} parent=1 // pred_region
      %60 = vst [vmem:[#allocation7] sm:$0xff] 0.0
    $region21: #{tpu_custom_call.1} parent=1 // pred_fallthru
      _
    %v61 = vld [vmem:[#allocation7] sm:$0xff]
    %v62 = vld [vmem:[#allocation2] sm:$0xff]
    %v63 = vld [vmem:[#allocation2 + $0x8] sm:$0xff]
    %v64 = vld [vmem:[#allocation5] sm:$0xff]
    %v65 = vld [vmem:[#allocation5 + $0x8] sm:$0xff]
    %v66 = vsub.f32 %v62, %v64
    %v67 = vsub.f32 %v63, %v65
    %v68 = vmul.f32 %v66, %v66
    %v69 = vmul.f32 %v67, %v67
    %v70 = vmul.f32 %v68, %v68
    %v71 = vmul.f32 %v69, %v69
    %v72 = vadd.f32 %v70, %v71
    %v73 = vadd.f32 %v61, %v72
    %74 = vst [vmem:[#allocation7] sm:$0xff] %v73
    // Predicated region
    $region22: #{tpu_custom_call.1} parent=1 // pred_check
      _
    $region23: #{tpu_custom_call.1} parent=1 // pred_check_branch
      %76 = sbr.rel (0) target = $region25
    $region24: #{tpu_custom_call.1} parent=1 // pred_region
      %78 = vsyncadd [#allocation4], 0
      %s80 = sshll.u32 [#allocation7], 4
      %s81 = int_to_ptr.vmem [resolvable:$true] %s80
      %s82 = sshll.u32 %s2, 4
      %s83 = int_to_ptr.hbm [resolvable:$true] %s82
      %85 = dma.vmem_to_hbm [thread:$0]  %s81, 128, %s83, [#allocation4]
    $region25: #{tpu_custom_call.1} parent=1 // pred_fallthru
      _
    // Predicated region
    $region26: #{tpu_custom_call.1} parent=1 // pred_check
      _
    $region27: #{tpu_custom_call.1} parent=1 // pred_check_branch
      %87 = sbr.rel (0) target = $region29
    $region28: #{tpu_custom_call.1} parent=1 // pred_region
      %89 = dma.done [#allocation4], 128
    $region29: #{tpu_custom_call.1} parent=1 // pred_fallthru
      _
    %90 = vsyncpa [#allocation3], 1
    %91 = vsyncpa [#allocation6], 1
    %92 = vsyncpa [#allocation4], 1

</llo_original>
